<compile_context>
chip_gen: v7x
topology: tpu7x:2x2x1
jax: 0.10.0
libtpu: 0.0.40
codegen_flags: <defaults>
</compile_context>

<pallas_src>
import jax
import jax.numpy as jnp
from jax.experimental import pallas as pl
from jax.experimental.pallas import tpu as pltpu

IN_DIM = 114
HID_DIM = 8
OUT_DIM = 113


def _round_up(x, m):
    return ((x + m - 1) // m) * m


def decoder_kernel(x_ref, w1_ref, b1_ref, w2_ref, b2_ref, o_ref):
    # Linear(114 -> 8): f32 MXU matmul (Mosaic pads K=114 / N=8 internally).
    h = jnp.dot(x_ref[...], w1_ref[...], preferred_element_type=jnp.float32)
    h = h + b1_ref[...]                      # f32 bias, broadcast over rows
    # LeakyReLU(0.2): single VALU op (valid since 0 < slope < 1).
    h = jnp.maximum(h, 0.2 * h)
    # Linear(8 -> 113): tiny K=8 matmul, f32 accumulate; MXU slack is huge.
    y = jnp.dot(h, w2_ref[...], preferred_element_type=jnp.float32)
    o_ref[...] = (y + b2_ref[...]).astype(o_ref.dtype)


def decoder_forward(x, w1, b1, w2, b2, *, tm=4096):
    """x: [B, 114] f32; w1: [114, 8]; b1: [1, 8]; w2: [8, 113]; b2: [1, 113].

    Returns [B, 113] f32.  `tm` is the batch-tile size (tuning knob: ~2048-4096
    on v5e, 4096-8192 on v6e, 8192+ on v7x with >=2 tiles so both TCs work).
    """
    B, in_dim = x.shape
    assert in_dim == IN_DIM

    # Balanced row tiles: pick the tile so the number of tiles matches
    # ceil(B / tm) and tiles divide B tightly -> ragged-block waste < 8 rows.
    num_tiles = max(1, pl.cdiv(B, tm))
    tm_eff = min(_round_up(pl.cdiv(B, num_tiles), 8), _round_up(B, 8))
    grid = (pl.cdiv(B, tm_eff),)

    x = x.astype(jnp.float32)
    w1 = w1.astype(jnp.float32)
    b1 = b1.astype(jnp.float32).reshape(1, HID_DIM)
    w2 = w2.astype(jnp.float32)
    b2 = b2.astype(jnp.float32).reshape(1, OUT_DIM)

    # Advisory cost estimate: tells XLA this op is memory-bound.
    cost = pl.CostEstimate(
        flops=2 * B * (IN_DIM * HID_DIM + HID_DIM * OUT_DIM),
        transcendentals=0,
        bytes_accessed=4 * (B * (IN_DIM + OUT_DIM)
                            + IN_DIM * HID_DIM + HID_DIM * OUT_DIM
                            + HID_DIM + OUT_DIM),
    )

    return pl.pallas_call(
        decoder_kernel,
        out_shape=jax.ShapeDtypeStruct((B, OUT_DIM), jnp.float32),
        grid=grid,
        in_specs=[
            pl.BlockSpec((tm_eff, IN_DIM), lambda i: (i, 0)),    # x row tile
            pl.BlockSpec((IN_DIM, HID_DIM), lambda i: (0, 0)),   # w1 (resident)
            pl.BlockSpec((1, HID_DIM), lambda i: (0, 0)),        # b1 (resident)
            pl.BlockSpec((HID_DIM, OUT_DIM), lambda i: (0, 0)),  # w2 (resident)
            pl.BlockSpec((1, OUT_DIM), lambda i: (0, 0)),        # b2 (resident)
        ],
        out_specs=pl.BlockSpec((tm_eff, OUT_DIM), lambda i: (i, 0)),
        compiler_params=pltpu.CompilerParams(
            dimension_semantics=("parallel",)),
        cost_estimate=cost,
    )(x, w1, b1, w2, b2)


def init_params(key):
    """Deterministic init mimicking torch.nn.Linear default (uniform +-1/sqrt(fan_in))."""
    k1, k2, k3, k4 = jax.random.split(key, 4)
    bound1 = 1.0 / jnp.sqrt(IN_DIM)
    bound2 = 1.0 / jnp.sqrt(HID_DIM)
    w1 = jax.random.uniform(k1, (IN_DIM, HID_DIM), jnp.float32, -bound1, bound1)
    b1 = jax.random.uniform(k2, (1, HID_DIM), jnp.float32, -bound1, bound1)
    w2 = jax.random.uniform(k3, (HID_DIM, OUT_DIM), jnp.float32, -bound2, bound2)
    b2 = jax.random.uniform(k4, (1, OUT_DIM), jnp.float32, -bound2, bound2)
    return w1, b1, w2, b2


if __name__ == "__main__":
    key = jax.random.PRNGKey(0)
    kx, kp = jax.random.split(key)

    B = 64  # small demo batch (production: batch thousands of rows per call)
    x = jax.random.normal(kx, (B, IN_DIM), dtype=jnp.float32)
    w1, b1, w2, b2 = init_params(kp)

    out = decoder_forward(x, w1, b1, w2, b2)
    out = jax.block_until_ready(out)

    # pure-JAX f32 reference
    h_ref = x @ w1 + b1
    h_ref = jnp.where(h_ref > 0, h_ref, 0.2 * h_ref)
    ref = h_ref @ w2 + b2

    assert out.shape == (B, OUT_DIM)
    assert jnp.allclose(out, ref, atol=1e-2, rtol=1e-2), (
        float(jnp.max(jnp.abs(out - ref))))

    print("KERNEL_OK")
</pallas_src>

<mosaic_0001>
module attributes {stable_mosaic.version = 11 : i64} {
  func.func @decoder_kernel(%arg0: i32, %arg1: memref<64x114xf32, #tpu.memory_space<vmem>>, %arg2: memref<114x8xf32, #tpu.memory_space<vmem>>, %arg3: memref<1x8xf32, #tpu.memory_space<vmem>>, %arg4: memref<8x113xf32, #tpu.memory_space<vmem>>, %arg5: memref<1x113xf32, #tpu.memory_space<vmem>>, %arg6: memref<64x113xf32, #tpu.memory_space<vmem>>) attributes {dimension_semantics = [#tpu.dimension_semantics<parallel>], iteration_bounds = array<i64: 1>, scalar_prefetch = 0 : i64, scratch_operands = 0 : i64, tpu.core_type = #tpu.core_type<tc>, window_params = [{transform_indices = @transform_0, window_bounds = array<i64: 64, 114>}, {pipeline_mode = #tpu.pipeline_mode<synchronous>, transform_indices = @transform_1, window_bounds = array<i64: 114, 8>}, {pipeline_mode = #tpu.pipeline_mode<synchronous>, transform_indices = @transform_2, window_bounds = array<i64: 1, 8>}, {pipeline_mode = #tpu.pipeline_mode<synchronous>, transform_indices = @transform_3, window_bounds = array<i64: 8, 113>}, {pipeline_mode = #tpu.pipeline_mode<synchronous>, transform_indices = @transform_4, window_bounds = array<i64: 1, 113>}, {transform_indices = @transform_5, window_bounds = array<i64: 64, 113>}]} {
    %c0 = arith.constant 0 : index
    %c0_0 = arith.constant 0 : index
    %0 = vector.load %arg1[%c0, %c0_0] : memref<64x114xf32, #tpu.memory_space<vmem>>, vector<64x114xf32>
    %c0_1 = arith.constant 0 : index
    %c0_2 = arith.constant 0 : index
    %1 = vector.load %arg2[%c0_1, %c0_2] : memref<114x8xf32, #tpu.memory_space<vmem>>, vector<114x8xf32>
    %cst = arith.constant dense<0.000000e+00> : vector<64x8xf32>
    %2 = tpu.matmul %0, %1, %cst {dimension_numbers = #tpu.dot_dimension_numbers<[1], [0], [0], [1], [0, 0, 1, 1], [], []>} : vector<64x114xf32>, vector<114x8xf32>, vector<64x8xf32> -> vector<64x8xf32>
    %c0_3 = arith.constant 0 : index
    %c0_4 = arith.constant 0 : index
    %3 = vector.load %arg3[%c0_3, %c0_4] : memref<1x8xf32, #tpu.memory_space<vmem>>, vector<1x8xf32>
    %4 = vector.broadcast %3 : vector<1x8xf32> to vector<64x8xf32>
    %5 = arith.addf %2, %4 : vector<64x8xf32>
    %cst_5 = arith.constant 2.000000e-01 : f32
    %6 = vector.broadcast %cst_5 : f32 to vector<64x8xf32>
    %7 = arith.mulf %6, %5 : vector<64x8xf32>
    %8 = arith.maximumf %5, %7 : vector<64x8xf32>
    %c0_6 = arith.constant 0 : index
    %c0_7 = arith.constant 0 : index
    %9 = vector.load %arg4[%c0_6, %c0_7] : memref<8x113xf32, #tpu.memory_space<vmem>>, vector<8x113xf32>
    %cst_8 = arith.constant dense<0.000000e+00> : vector<64x113xf32>
    %10 = tpu.matmul %8, %9, %cst_8 {dimension_numbers = #tpu.dot_dimension_numbers<[1], [0], [0], [1], [0, 0, 1, 1], [], []>} : vector<64x8xf32>, vector<8x113xf32>, vector<64x113xf32> -> vector<64x113xf32>
    %c0_9 = arith.constant 0 : index
    %c0_10 = arith.constant 0 : index
    %11 = vector.load %arg5[%c0_9, %c0_10] : memref<1x113xf32, #tpu.memory_space<vmem>>, vector<1x113xf32>
    %12 = vector.broadcast %11 : vector<1x113xf32> to vector<64x113xf32>
    %13 = arith.addf %10, %12 : vector<64x113xf32>
    %c0_11 = arith.constant 0 : index
    %c0_12 = arith.constant 0 : index
    %14 = vector.load %arg6[%c0_11, %c0_12] : memref<64x113xf32, #tpu.memory_space<vmem>>, vector<64x113xf32>
    tpu.vector_store %arg6[%c0_11, %c0_12], %13 {strides = array<i32>} : memref<64x113xf32, #tpu.memory_space<vmem>>, vector<64x113xf32>,
    return
  }
  func.func @transform_0(%arg0: i32) -> (i32, i32) {
    %c0_i32 = arith.constant 0 : i32
    %c0_i32_0 = arith.constant 0 : i32
    return %arg0, %c0_i32 : i32, i32
  }
  func.func @transform_1(%arg0: i32) -> (i32, i32) {
    %c0_i32 = arith.constant 0 : i32
    %c0_i32_0 = arith.constant 0 : i32
    %c0_i32_1 = arith.constant 0 : i32
    return %c0_i32, %c0_i32_0 : i32, i32
  }
  func.func @transform_2(%arg0: i32) -> (i32, i32) {
    %c0_i32 = arith.constant 0 : i32
    %c0_i32_0 = arith.constant 0 : i32
    %c0_i32_1 = arith.constant 0 : i32
    return %c0_i32, %c0_i32_0 : i32, i32
  }
  func.func @transform_3(%arg0: i32) -> (i32, i32) {
    %c0_i32 = arith.constant 0 : i32
    %c0_i32_0 = arith.constant 0 : i32
    %c0_i32_1 = arith.constant 0 : i32
    return %c0_i32, %c0_i32_0 : i32, i32
  }
  func.func @transform_4(%arg0: i32) -> (i32, i32) {
    %c0_i32 = arith.constant 0 : i32
    %c0_i32_0 = arith.constant 0 : i32
    %c0_i32_1 = arith.constant 0 : i32
    return %c0_i32, %c0_i32_0 : i32, i32
  }
  func.func @transform_5(%arg0: i32) -> (i32, i32) {
    %c0_i32 = arith.constant 0 : i32
    %c0_i32_0 = arith.constant 0 : i32
    return %arg0, %c0_i32 : i32, i32
  }
}

</mosaic_0001>

<llo_original>
// kernel: tpu_custom_call.1
$region0: #{tpu_custom_call.1}
  #allocation0 [shape = 'u32[]', space=smem, size = 0x4, offset = 0x4, fixed_abs, tag = 'smem constant byte address 0x4 - core index']
  #allocation1 [shape = 'u32[144,128]{1,0:T(1,128)}', space=vmem, size = 0x12000, scoped, tag = 'internal scratch']
  %s0 = inlined_call_operand.vmem [shape: f32[64,114], index: 0, kind: input, shape index: {}]
  %s1 = inlined_call_operand.vmem [shape: f32[114,8], index: 1, kind: input, shape index: {}]
  %s2 = inlined_call_operand.vmem [shape: f32[1,8], index: 2, kind: input, shape index: {}]
  %s3 = inlined_call_operand.vmem [shape: f32[8,113], index: 3, kind: input, shape index: {}]
  %s4 = inlined_call_operand.vmem [shape: f32[1,113], index: 4, kind: input, shape index: {}]
  %s5 = inlined_call_operand.hbm [shape: f32[64,113], index: 5, kind: output, shape index: {}]
  %s6 = sld [smem:[#allocation0]]
  $region30: #{tpu_custom_call.1} parent=0
    _
  %s8 = ssub.s32 1, %s6
  %s9 = scalar_select 0, %s8, %s6
  $region1: #{tpu_custom_call.1} parent=0
    #allocation2 [shape = 'u8[32768]{0}', space=vmem, size = 0x8000, scoped, tag = 'output window, operand 0, single buffered']
    #allocation3 [shape = 's32[1]{0}', space=sflag, size = 0x4, scoped, tag = 'scoped memory for tpu_custom_call.1']
    %10 = vsyncpa [#allocation3], 0
    // Predicated region
    $region2: #{tpu_custom_call.1} parent=1 // pred_check
      _
    $region3: #{tpu_custom_call.1} parent=1 // pred_check_branch
      %12 = sbr.rel (0) target = $region5
    $region4: #{tpu_custom_call.1} parent=1 // pred_region
      _
    $region5: #{tpu_custom_call.1} parent=1 // pred_fallthru
      _
    // Predicated region
    $region6: #{tpu_custom_call.1} parent=1 // pred_check
      _
    $region7: #{tpu_custom_call.1} parent=1 // pred_check_branch
      %14 = sbr.rel (0) target = $region9
    $region8: #{tpu_custom_call.1} parent=1 // pred_region
      _
    $region9: #{tpu_custom_call.1} parent=1 // pred_fallthru
      _
    // Predicated region
    $region10: #{tpu_custom_call.1} parent=1 // pred_check
      _
    $region11: #{tpu_custom_call.1} parent=1 // pred_check_branch
      %16 = sbr.rel (0) target = $region13
    $region12: #{tpu_custom_call.1} parent=1 // pred_region
      _
    $region13: #{tpu_custom_call.1} parent=1 // pred_fallthru
      _
    // Predicated region
    $region14: #{tpu_custom_call.1} parent=1 // pred_check
      _
    $region15: #{tpu_custom_call.1} parent=1 // pred_check_branch
      %18 = sbr.rel (0) target = $region17
    $region16: #{tpu_custom_call.1} parent=1 // pred_region
      _
    $region17: #{tpu_custom_call.1} parent=1 // pred_fallthru
      _
    // Predicated region
    $region18: #{tpu_custom_call.1} parent=1 // pred_check
      _
    $region19: #{tpu_custom_call.1} parent=1 // pred_check_branch
      %20 = sbr.rel (0) target = $region21
    $region20: #{tpu_custom_call.1} parent=1 // pred_region
      _
    $region21: #{tpu_custom_call.1} parent=1 // pred_fallthru
      _
    %v21 = vld [vmem:[%s0] sm:$0xff]
    %v22 = vld [vmem:[%s0 + $0x8] sm:$0xff]
    %v23 = vld [vmem:[%s0 + $0x10] sm:$0xff]
    %v24 = vld [vmem:[%s0 + $0x18] sm:$0xff]
    %v25 = vld [vmem:[%s0 + $0x20] sm:$0xff]
    %v26 = vld [vmem:[%s0 + $0x28] sm:$0xff]
    %v27 = vld [vmem:[%s0 + $0x30] sm:$0xff]
    %v28 = vld [vmem:[%s0 + $0x38] sm:$0xff]
    %v29 = vld [vmem:[%s1] sm:$0xff]
    %v30 = vld [vmem:[%s1 + $0x8] sm:$0xff]
    %v31 = vld [vmem:[%s1 + $0x10] sm:$0xff]
    %v32 = vld [vmem:[%s1 + $0x18] sm:$0xff]
    %v33 = vld [vmem:[%s1 + $0x20] sm:$0xff]
    %v34 = vld [vmem:[%s1 + $0x28] sm:$0xff]
    %v35 = vld [vmem:[%s1 + $0x30] sm:$0xff]
    %v36 = vld [vmem:[%s1 + $0x38] sm:$0xff]
    %v37 = vld [vmem:[%s1 + $0x40] sm:$0xff]
    %v38 = vld [vmem:[%s1 + $0x48] sm:$0xff]
    %v39 = vld [vmem:[%s1 + $0x50] sm:$0xff]
    %v40 = vld [vmem:[%s1 + $0x58] sm:$0xff]
    %v41 = vld [vmem:[%s1 + $0x60] sm:$0xff]
    %v42 = vld [vmem:[%s1 + $0x68] sm:$0xff]
    %v43 = vld [vmem:[%s1 + $0x70] sm:$0x3]
    %v44 = vld [vmem:[%s2] sm:$0x1]
    %v46 = vlaneseq
    %v47 = vshrl.u32 %v46, 7
    %v48 = vsub.s32 0, %v47
    %v49 = vrot.slane %v44, %v48
    %vm51 = vcmask 932864
    %v53 = vsel %vm51, %v21, 0
    %v56 = vsel %vm51, %v22, 0
    %v59 = vsel %vm51, %v23, 0
    %v62 = vsel %vm51, %v24, 0
    %v65 = vsel %vm51, %v25, 0
    %v68 = vsel %vm51, %v26, 0
    %v71 = vsel %vm51, %v27, 0
    %v74 = vsel %vm51, %v28, 0
    %vm76 = vcmask 1041408
    %v78 = vsel %vm76, %v43, 0
    %80 = vmatprep.subr.mxu0 0.0
    %81 = vmatpush1.msra.mxu0 %v29
    %82 = vmatprep.subr.mxu0 0.0
    %83 = vmatpush1.msra.mxu0 %v30
    %84 = vmatprep.subr.mxu0 0.0
    %85 = vmatpush1.msra.mxu0 %v31
    %86 = vmatprep.subr.mxu0 0.0
    %87 = vmatpush1.msra.mxu0 %v32
    %88 = vmatprep.subr.mxu0 0.0
    %89 = vmatpush1.msra.mxu0 %v33
    %90 = vmatprep.subr.mxu0 0.0
    %91 = vmatpush1.msra.mxu0 %v34
    %92 = vmatprep.subr.mxu0 0.0
    %93 = vmatpush1.msra.mxu0 %v35
    %94 = vmatprep.subr.mxu0 0.0
    %95 = vmatpush1.msra.mxu0 %v36
    %96 = vmatprep.subr.mxu0 0.0
    %97 = vmatpush1.msra.mxu0 %v37
    %98 = vmatprep.subr.mxu0 0.0
    %99 = vmatpush1.msra.mxu0 %v38
    %100 = vmatprep.subr.mxu0 0.0
    %101 = vmatpush1.msra.mxu0 %v39
    %102 = vmatprep.subr.mxu0 0.0
    %103 = vmatpush1.msra.mxu0 %v40
    %104 = vmatprep.subr.mxu0 0.0
    %105 = vmatpush1.msra.mxu0 %v41
    %106 = vmatprep.subr.mxu0 0.0
    %107 = vmatpush1.msra.mxu0 %v42
    %108 = vmatprep.subr.mxu0 0.0
    %109 = vmatpush1.msra.mxu0 %v78
    %110 = vmatprep.subr.mxu0 0.0
    %111 = vmatpush1.msra.mxu0 0.0
    %112 = vmatprep.subr.mxu0 0.0
    %113 = vmatpush1.msra.mxu0 0.0
    %114 = vmatprep.subr.mxu0 0.0
    %115 = vmatpush1.msra.mxu0 0.0
    %116 = vmatprep.subr.mxu0 0.0
    %117 = vmatpush1.msra.mxu0 0.0
    %118 = vmatprep.subr.mxu0 0.0
    %119 = vmatpush1.msra.mxu0 0.0
    %120 = vmatprep.subr.mxu0 0.0
    %121 = vmatpush1.msra.mxu0 0.0
    %122 = vmatprep.subr.mxu0 0.0
    %123 = vmatpush1.msra.mxu0 0.0
    %124 = vmatprep.subr.mxu0 0.0
    %125 = vmatpush1.msra.mxu0 0.0
    %126 = vmatprep.subr.mxu0 0.0
    %127 = vmatpush1.msra.mxu0 0.0
    %128 = vmatprep.subr.mxu0 0.0
    %129 = vmatpush1.msra.mxu0 0.0
    %130 = vmatprep.subr.mxu0 0.0
    %131 = vmatpush1.msra.mxu0 0.0
    %132 = vmatprep.subr.mxu0 0.0
    %133 = vmatpush1.msra.mxu0 0.0
    %134 = vmatprep.subr.mxu0 0.0
    %135 = vmatpush1.msra.mxu0 0.0
    %136 = vmatprep.subr.mxu0 0.0
    %137 = vmatpush1.msra.mxu0 0.0
    %138 = vmatprep.subr.mxu0 0.0
    %139 = vmatpush1.msra.mxu0 0.0
    %140 = vmatprep.subr.mxu0 0.0
    %141 = vmatpush1.msra.mxu0 0.0
    %142 = vmatprep.subr.mxu0 0.0
    %143 = vmatpush1.msra.mxu0 0.0
    %144 = vmatprep.mubr.f32.mxu0 0.0
    %145 = vmatmul.mubr.f32.gmra.mrb[0].mxu0 %v53
    %v146 = vpop.f32.mrb[0].mxu0
    %v147 = vadd.f32 %v49, %v146
    %v148 = vpop.f32.mrb[0].mxu0
    %149 = vmatprep.mubr.f32.mxu0 0.0
    %150 = vmatmul.mubr.f32.gmra.mrb[0].mxu0 %v56
    %v151 = vpop.f32.mrb[0].mxu0
    %v152 = vadd.f32 %v49, %v151
    %v153 = vpop.f32.mrb[0].mxu0
    %154 = vmatprep.mubr.f32.mxu0 0.0
    %155 = vmatmul.mubr.f32.gmra.mrb[0].mxu0 %v59
    %v156 = vpop.f32.mrb[0].mxu0
    %v157 = vadd.f32 %v49, %v156
    %v158 = vpop.f32.mrb[0].mxu0
    %159 = vmatprep.mubr.f32.mxu0 0.0
    %160 = vmatmul.mubr.f32.gmra.mrb[0].mxu0 %v62
    %v161 = vpop.f32.mrb[0].mxu0
    %v162 = vadd.f32 %v49, %v161
    %v163 = vpop.f32.mrb[0].mxu0
    %164 = vmatprep.mubr.f32.mxu0 0.0
    %165 = vmatmul.mubr.f32.gmra.mrb[0].mxu0 %v65
    %v166 = vpop.f32.mrb[0].mxu0
    %v167 = vadd.f32 %v49, %v166
    %v168 = vpop.f32.mrb[0].mxu0
    %169 = vmatprep.mubr.f32.mxu0 0.0
    %170 = vmatmul.mubr.f32.gmra.mrb[0].mxu0 %v68
    %v171 = vpop.f32.mrb[0].mxu0
    %v172 = vadd.f32 %v49, %v171
    %v173 = vpop.f32.mrb[0].mxu0
    %174 = vmatprep.mubr.f32.mxu0 0.0
    %175 = vmatmul.mubr.f32.gmra.mrb[0].mxu0 %v71
    %v176 = vpop.f32.mrb[0].mxu0
    %v177 = vadd.f32 %v49, %v176
    %v178 = vpop.f32.mrb[0].mxu0
    %179 = vmatprep.mubr.f32.mxu0 0.0
    %180 = vmatmul.mubr.f32.gmra.mrb[0].mxu0 %v74
    %v181 = vpop.f32.mrb[0].mxu0
    %v182 = vadd.f32 %v49, %v181
    %v183 = vpop.f32.mrb[0].mxu0
    %184 = vdwg.mxu0
    %v185 = vmul.f32 %v147, 0.2
    %v186 = vmul.f32 %v152, 0.2
    %v187 = vmul.f32 %v157, 0.2
    %v188 = vmul.f32 %v162, 0.2
    %v189 = vmul.f32 %v167, 0.2
    %v190 = vmul.f32 %v172, 0.2
    %v191 = vmul.f32 %v177, 0.2
    %v192 = vmul.f32 %v182, 0.2
    %v193 = vmax.f32 %v147, %v185
    %v194 = vmax.f32 %v152, %v186
    %v195 = vmax.f32 %v157, %v187
    %v196 = vmax.f32 %v162, %v188
    %v197 = vmax.f32 %v167, %v189
    %v198 = vmax.f32 %v172, %v190
    %v199 = vmax.f32 %v177, %v191
    %v200 = vmax.f32 %v182, %v192
    %v201 = vld [vmem:[%s3] sm:$0xff]
    %v202 = vld [vmem:[%s4] sm:$0x1]
    %v204 = vlaneseq
    %v205 = vshrl.u32 %v204, 7
    %v206 = vsub.s32 0, %v205
    %v207 = vrot.slane %v202, %v206
    %vm209 = vcmask 64512
    %v211 = vsel %vm209, %v193, 0
    %v214 = vsel %vm209, %v194, 0
    %v217 = vsel %vm209, %v195, 0
    %v220 = vsel %vm209, %v196, 0
    %v223 = vsel %vm209, %v197, 0
    %v226 = vsel %vm209, %v198, 0
    %v229 = vsel %vm209, %v199, 0
    %v232 = vsel %vm209, %v200, 0
    %234 = vmatprep.subr.mxu0 0.0
    %235 = vmatpush1.msra.mxu0 %v201
    %236 = vmatprep.subr.mxu0 0.0
    %237 = vmatpush1.msra.mxu0 0.0
    %238 = vmatprep.subr.mxu0 0.0
    %239 = vmatpush1.msra.mxu0 0.0
    %240 = vmatprep.subr.mxu0 0.0
    %241 = vmatpush1.msra.mxu0 0.0
    %242 = vmatprep.subr.mxu0 0.0
    %243 = vmatpush1.msra.mxu0 0.0
    %244 = vmatprep.subr.mxu0 0.0
    %245 = vmatpush1.msra.mxu0 0.0
    %246 = vmatprep.subr.mxu0 0.0
    %247 = vmatpush1.msra.mxu0 0.0
    %248 = vmatprep.subr.mxu0 0.0
    %249 = vmatpush1.msra.mxu0 0.0
    %250 = vmatprep.subr.mxu0 0.0
    %251 = vmatpush1.msra.mxu0 0.0
    %252 = vmatprep.subr.mxu0 0.0
    %253 = vmatpush1.msra.mxu0 0.0
    %254 = vmatprep.subr.mxu0 0.0
    %255 = vmatpush1.msra.mxu0 0.0
    %256 = vmatprep.subr.mxu0 0.0
    %257 = vmatpush1.msra.mxu0 0.0
    %258 = vmatprep.subr.mxu0 0.0
    %259 = vmatpush1.msra.mxu0 0.0
    %260 = vmatprep.subr.mxu0 0.0
    %261 = vmatpush1.msra.mxu0 0.0
    %262 = vmatprep.subr.mxu0 0.0
    %263 = vmatpush1.msra.mxu0 0.0
    %264 = vmatprep.subr.mxu0 0.0
    %265 = vmatpush1.msra.mxu0 0.0
    %266 = vmatprep.subr.mxu0 0.0
    %267 = vmatpush1.msra.mxu0 0.0
    %268 = vmatprep.subr.mxu0 0.0
    %269 = vmatpush1.msra.mxu0 0.0
    %270 = vmatprep.subr.mxu0 0.0
    %271 = vmatpush1.msra.mxu0 0.0
    %272 = vmatprep.subr.mxu0 0.0
    %273 = vmatpush1.msra.mxu0 0.0
    %274 = vmatprep.subr.mxu0 0.0
    %275 = vmatpush1.msra.mxu0 0.0
    %276 = vmatprep.subr.mxu0 0.0
    %277 = vmatpush1.msra.mxu0 0.0
    %278 = vmatprep.subr.mxu0 0.0
    %279 = vmatpush1.msra.mxu0 0.0
    %280 = vmatprep.subr.mxu0 0.0
    %281 = vmatpush1.msra.mxu0 0.0
    %282 = vmatprep.subr.mxu0 0.0
    %283 = vmatpush1.msra.mxu0 0.0
    %284 = vmatprep.subr.mxu0 0.0
    %285 = vmatpush1.msra.mxu0 0.0
    %286 = vmatprep.subr.mxu0 0.0
    %287 = vmatpush1.msra.mxu0 0.0
    %288 = vmatprep.subr.mxu0 0.0
    %289 = vmatpush1.msra.mxu0 0.0
    %290 = vmatprep.subr.mxu0 0.0
    %291 = vmatpush1.msra.mxu0 0.0
    %292 = vmatprep.subr.mxu0 0.0
    %293 = vmatpush1.msra.mxu0 0.0
    %294 = vmatprep.subr.mxu0 0.0
    %295 = vmatpush1.msra.mxu0 0.0
    %296 = vmatprep.subr.mxu0 0.0
    %297 = vmatpush1.msra.mxu0 0.0
    %298 = vmatprep.mubr.f32.mxu0 0.0
    %299 = vmatmul.mubr.f32.gmra.mrb[0].mxu0 %v211
    %v300 = vpop.f32.mrb[0].mxu0
    %v301 = vadd.f32 %v207, %v300
    %v302 = vpop.f32.mrb[0].mxu0
    %303 = vmatprep.mubr.f32.mxu0 0.0
    %304 = vmatmul.mubr.f32.gmra.mrb[0].mxu0 %v214
    %v305 = vpop.f32.mrb[0].mxu0
    %v306 = vadd.f32 %v207, %v305
    %v307 = vpop.f32.mrb[0].mxu0
    %308 = vmatprep.mubr.f32.mxu0 0.0
    %309 = vmatmul.mubr.f32.gmra.mrb[0].mxu0 %v217
    %v310 = vpop.f32.mrb[0].mxu0
    %v311 = vadd.f32 %v207, %v310
    %v312 = vpop.f32.mrb[0].mxu0
    %313 = vmatprep.mubr.f32.mxu0 0.0
    %314 = vmatmul.mubr.f32.gmra.mrb[0].mxu0 %v220
    %v315 = vpop.f32.mrb[0].mxu0
    %v316 = vadd.f32 %v207, %v315
    %v317 = vpop.f32.mrb[0].mxu0
    %318 = vmatprep.mubr.f32.mxu0 0.0
    %319 = vmatmul.mubr.f32.gmra.mrb[0].mxu0 %v223
    %v320 = vpop.f32.mrb[0].mxu0
    %v321 = vadd.f32 %v207, %v320
    %v322 = vpop.f32.mrb[0].mxu0
    %323 = vmatprep.mubr.f32.mxu0 0.0
    %324 = vmatmul.mubr.f32.gmra.mrb[0].mxu0 %v226
    %v325 = vpop.f32.mrb[0].mxu0
    %v326 = vadd.f32 %v207, %v325
    %v327 = vpop.f32.mrb[0].mxu0
    %328 = vmatprep.mubr.f32.mxu0 0.0
    %329 = vmatmul.mubr.f32.gmra.mrb[0].mxu0 %v229
    %v330 = vpop.f32.mrb[0].mxu0
    %v331 = vadd.f32 %v207, %v330
    %v332 = vpop.f32.mrb[0].mxu0
    %333 = vmatprep.mubr.f32.mxu0 0.0
    %334 = vmatmul.mubr.f32.gmra.mrb[0].mxu0 %v232
    %v335 = vpop.f32.mrb[0].mxu0
    %v336 = vadd.f32 %v207, %v335
    %v337 = vpop.f32.mrb[0].mxu0
    %338 = vdwg.mxu0
    %vm339 = vcmask 924672
    %340 = vst.msk [vmem:[#allocation2] sm:$0xff] %vm339, %v301
    %341 = vst.msk [vmem:[#allocation2 + $0x8] sm:$0xff] %vm339, %v306
    %342 = vst.msk [vmem:[#allocation2 + $0x10] sm:$0xff] %vm339, %v311
    %343 = vst.msk [vmem:[#allocation2 + $0x18] sm:$0xff] %vm339, %v316
    %344 = vst.msk [vmem:[#allocation2 + $0x20] sm:$0xff] %vm339, %v321
    %345 = vst.msk [vmem:[#allocation2 + $0x28] sm:$0xff] %vm339, %v326
    %346 = vst.msk [vmem:[#allocation2 + $0x30] sm:$0xff] %vm339, %v331
    %347 = vst.msk [vmem:[#allocation2 + $0x38] sm:$0xff] %vm339, %v336
    // Predicated region
    $region22: #{tpu_custom_call.1} parent=1 // pred_check
      _
    $region23: #{tpu_custom_call.1} parent=1 // pred_check_branch
      %349 = sbr.rel (0) target = $region25
    $region24: #{tpu_custom_call.1} parent=1 // pred_region
      %s351 = ssub.s32 1024, 1024
      %352 = vsyncadd [#allocation3], %s351
      %s353 = sshll.u32 [#allocation2], 4
      %s354 = int_to_ptr.vmem [resolvable:$true] %s353
      %359 = dma.vmem_to_hbm [thread:$0]  %s354, 1024, %s5, [#allocation3], 128, 128, 8
    $region25: #{tpu_custom_call.1} parent=1 // pred_fallthru
      _
    // Predicated region
    $region26: #{tpu_custom_call.1} parent=1 // pred_check
      _
    $region27: #{tpu_custom_call.1} parent=1 // pred_check_branch
      %361 = sbr.rel (0) target = $region29
    $region28: #{tpu_custom_call.1} parent=1 // pred_region
      %362 = dma.done [#allocation3], 1024
    $region29: #{tpu_custom_call.1} parent=1 // pred_fallthru
      _
    %363 = vsyncpa [#allocation3], 1

</llo_original>
